<compile_context>
chip_gen: v7x
topology: tpu7x:2x2x1
jax: 0.10.0
libtpu: 0.0.40
codegen_flags: <defaults>
</compile_context>

<pallas_src>
import functools

import jax
import jax.numpy as jnp
from jax.experimental import pallas as pl
from jax.experimental.pallas import tpu as pltpu


def _round_up(x, m):
    return (x + m - 1) // m * m


def _pick_tile_ho(Ho, Wo):
    """Smallest divisor t of Ho whose flattened tile (t*Wo) is a multiple of
    128 lanes (lane-dense output stores); fall back to the whole image."""
    for t in range(1, Ho + 1):
        if Ho % t == 0 and (t * Wo) % 128 == 0:
            return t
    return Ho


def _conv_bn_relu6_kernel(x_ref, w_ref, shift_ref, o_ref, *,
                          kh, kw, stride, tile_ho, Wo, c_out_p):
    """One TILE_HO-row output tile of one image.

    x_ref:     (Hp, Wp, C_in)          padded bf16 image (resident across h)
    w_ref:     (kh*kw*C_in, Cp)        bf16 folded weight (BN scale merged)
    shift_ref: (1, Cp)                 f32 BN shift (+ folded conv bias)
    o_ref:     (c_out_p, tile_ho*Wo)   f32, channels on sublanes, spatial on lanes
    """
    h = pl.program_id(1)
    c_in = x_ref.shape[-1]

    # Rows of the padded image needed by this output tile (includes kh-1 halo).
    n_in_rows = (tile_ho - 1) * stride + kh
    row0 = pl.multiple_of(h * tile_ho * stride, tile_ho * stride)
    xw = x_ref[pl.ds(row0, n_in_rows), :, :]            # (n_in_rows, Wp, C_in)

    # In-kernel im2col folded into ONE contraction: concatenate the kh*kw
    # shifted windows along the channel (lane) axis -> K = kh*kw*C_in.
    taps = []
    for i in range(kh):
        for j in range(kw):
            # TODO(synk): stride > 1 relies on value-level strided slicing and
            # is untested here; the demo / typical BasicConv2d use is stride=1.
            taps.append(xw[i:i + stride * (tile_ho - 1) + 1:stride,
                           j:j + stride * (Wo - 1) + 1:stride, :])
    patch = jnp.concatenate(taps, axis=-1)              # (tile_ho, Wo, K) bf16
    patch2d = patch.reshape(tile_ho * Wo, kh * kw * c_in)

    # Single MXU contraction, f32 accumulation.
    acc = jnp.dot(patch2d, w_ref[...],
                  preferred_element_type=jnp.float32)   # (rows, Cp) f32

    # f32 epilogue (BN shift + ReLU6); safe on v5e which has no bf16 VPU.
    y = jnp.clip(acc + shift_ref[...], 0.0, 6.0)

    # Channels -> sublanes, flattened spatial -> lanes: lane-dense store with
    # only round_up(C_out, 8) channels written to HBM (no 128-pad write amp).
    yt = jnp.transpose(y, (1, 0))                       # (Cp, rows)
    o_ref[...] = yt[:c_out_p, :].astype(o_ref.dtype)


@functools.partial(jax.jit, static_argnames=("stride", "pad", "tile_ho"))
def basic_conv2d(x, weight, conv_bias, gamma, beta, running_mean, running_var,
                 *, stride=1, pad=1, eps=1e-5, tile_ho=None):
    """Forward of BasicConv2d.  x: (N, C_in, H, W) NCHW f32; returns NCHW f32."""
    N, C_in, H, W = x.shape
    C_out, _, kh, kw = weight.shape
    Ho = (H + 2 * pad - kh) // stride + 1
    Wo = (W + 2 * pad - kw) // stride + 1
    Hp, Wp = H + 2 * pad, W + 2 * pad
    K = kh * kw * C_in
    Cp = _round_up(C_out, 128)        # MXU output columns (VMEM only)
    c_out_p = _round_up(C_out, 8)     # HBM output channel dim (sublane pad)

    if tile_ho is None:
        tile_ho = _pick_tile_ho(Ho, Wo)
    assert Ho % tile_ho == 0
    tile_rows = tile_ho * Wo
    n_h = Ho // tile_ho

    # NCHW -> NHWC (channels on lanes), pad spatially once, cast to bf16 for
    # the MXU (accumulation stays f32 inside the kernel).
    # TODO(synk): for multi-layer NHWC pipelines, skip the boundary transpose
    # and fuse the zero-padding into the kernel via masked edge loads.
    x_nhwc = jnp.transpose(x, (0, 2, 3, 1))
    xp = jnp.pad(x_nhwc, ((0, 0), (pad, pad), (pad, pad), (0, 0))
                 ).astype(jnp.bfloat16)

    # Fold inference BatchNorm (+ conv bias):
    #   y = scale * conv(x) + shift,  scale = gamma / sqrt(var + eps),
    #   shift = beta + scale * (bias - mean).  Scale goes into the weight.
    inv_std = jax.lax.rsqrt(running_var + eps)
    scale = gamma * inv_std                                   # (C_out,)
    shift = beta + scale * (conv_bias - running_mean)         # (C_out,)

    w_eff = weight * scale[:, None, None, None]               # (C_out,C_in,kh,kw)
    # Contraction index ordered as (i, j, c_in) to match the in-kernel concat.
    w2 = jnp.transpose(w_eff, (2, 3, 1, 0)).reshape(K, C_out)
    w_pad = jnp.zeros((K, Cp), jnp.float32).at[:, :C_out].set(w2)
    w_pad = w_pad.astype(jnp.bfloat16)
    shift_pad = jnp.zeros((1, Cp), jnp.float32).at[0, :C_out].set(shift)

    kernel = functools.partial(_conv_bn_relu6_kernel, kh=kh, kw=kw,
                               stride=stride, tile_ho=tile_ho, Wo=Wo,
                               c_out_p=c_out_p)

    # Explicit scoped-VMEM budget (review item): sized from the actual tiles,
    # clamped under v7x's 64 MiB physical VMEM.
    vmem_est = (2 * Hp * Wp * C_in * 2            # bf16 input image (x2 bufs)
                + 2 * K * Cp * 2                  # bf16 weight
                + 2 * Cp * 4                      # shift
                + 2 * c_out_p * tile_rows * 4     # f32 output tile (x2 bufs)
                + tile_rows * (Cp + K) * 4)       # acc + patch intermediates
    vmem_limit = int(min(max(4 * vmem_est, 32 * 1024 * 1024), 48 * 1024 * 1024))

    out = pl.pallas_call(
        kernel,
        out_shape=jax.ShapeDtypeStruct((N, c_out_p, Ho * Wo), jnp.float32),
        grid_spec=pltpu.PrefetchScalarGridSpec(
            num_scalar_prefetch=0,
            grid=(N, n_h),
            in_specs=[
                # Whole padded image; constant over h -> DMA'd once per image.
                pl.BlockSpec((None, Hp, Wp, C_in), lambda n, h: (n, 0, 0, 0)),
                # Folded weight and shift are small and resident.
                pl.BlockSpec((K, Cp), lambda n, h: (0, 0)),
                pl.BlockSpec((1, Cp), lambda n, h: (0, 0)),
            ],
            out_specs=pl.BlockSpec((None, c_out_p, tile_rows),
                                   lambda n, h: (n, 0, h)),
        ),
        compiler_params=pltpu.CompilerParams(
            dimension_semantics=("parallel", "parallel"),
            vmem_limit_bytes=vmem_limit),
    )(xp, w_pad, shift_pad)

    # Output is already channel-major: a free contiguous reshape, then drop the
    # (at most 7) sublane-padding channels.  No transpose pass over HBM.
    out = out.reshape(N, c_out_p, Ho, Wo)
    if c_out_p != C_out:
        out = out[:, :C_out]
    return out


def _reference_f32(x, weight, conv_bias, gamma, beta, running_mean, running_var,
                   *, stride=1, pad=1, eps=1e-5):
    """Exact f32 PyTorch-semantics reference (conv + bias + BN + ReLU6)."""
    y = jax.lax.conv_general_dilated(
        x, weight, window_strides=(stride, stride),
        padding=[(pad, pad), (pad, pad)],
        dimension_numbers=("NCHW", "OIHW", "NCHW"),
        precision=jax.lax.Precision.HIGHEST)
    y = y + conv_bias[None, :, None, None]
    y = (y - running_mean[None, :, None, None]) * jax.lax.rsqrt(
        running_var[None, :, None, None] + eps)
    y = y * gamma[None, :, None, None] + beta[None, :, None, None]
    return jnp.clip(y, 0.0, 6.0)


def _reference_bf16_inputs(x, weight, conv_bias, gamma, beta, running_mean,
                           running_var, *, stride=1, pad=1, eps=1e-5):
    """Same math as the kernel: BN scale folded into the weight, activation and
    folded weight rounded to bf16, f32 accumulation."""
    inv_std = jax.lax.rsqrt(running_var + eps)
    scale = gamma * inv_std
    shift = beta + scale * (conv_bias - running_mean)
    w_q = (weight * scale[:, None, None, None]
           ).astype(jnp.bfloat16).astype(jnp.float32)
    x_q = x.astype(jnp.bfloat16).astype(jnp.float32)
    y = jax.lax.conv_general_dilated(
        x_q, w_q, window_strides=(stride, stride),
        padding=[(pad, pad), (pad, pad)],
        dimension_numbers=("NCHW", "OIHW", "NCHW"),
        precision=jax.lax.Precision.HIGHEST)
    y = y + shift[None, :, None, None]
    return jnp.clip(y, 0.0, 6.0)


if __name__ == "__main__":
    # Small shapes consistent with the module: N=2, C_in=4, H=W=16,
    # C_out=8, kernel_size=3, padding=1 (stride=1).
    N, C_in, H, W = 2, 4, 16, 16
    C_out, ksize, pad, stride = 8, 3, 1, 1

    key = jax.random.PRNGKey(0)
    kx, kw_, kb, kg, kbeta, km, kv = jax.random.split(key, 7)

    x = jax.random.normal(kx, (N, C_in, H, W), dtype=jnp.float32)
    weight = jax.random.normal(kw_, (C_out, C_in, ksize, ksize), jnp.float32) * 0.1
    conv_bias = jax.random.normal(kb, (C_out,), jnp.float32) * 0.1
    gamma = 1.0 + 0.1 * jax.random.normal(kg, (C_out,), jnp.float32)
    beta = 0.1 * jax.random.normal(kbeta, (C_out,), jnp.float32)
    running_mean = 0.1 * jax.random.normal(km, (C_out,), jnp.float32)
    running_var = jnp.abs(jax.random.normal(kv, (C_out,), jnp.float32)) + 0.5

    out = basic_conv2d(x, weight, conv_bias, gamma, beta,
                       running_mean, running_var, stride=stride, pad=pad)
    out = jax.block_until_ready(out)
    assert out.shape == (N, C_out, H, W)

    # Tight check against a reference using the identical bf16-rounded inputs
    # (validates the kernel math to accumulation-order level) ...
    ref_q = _reference_bf16_inputs(x, weight, conv_bias, gamma, beta,
                                   running_mean, running_var,
                                   stride=stride, pad=pad)
    assert jnp.allclose(out, ref_q, atol=1e-3, rtol=1e-3), \
        "mismatch vs bf16-quantized reference"

    # ... and a looser check against the full f32 module semantics (bf16
    # activation/weight rounding is the only difference).
    ref = _reference_f32(x, weight, conv_bias, gamma, beta,
                         running_mean, running_var, stride=stride, pad=pad)
    assert jnp.allclose(out, ref, atol=5e-2, rtol=5e-2), \
        "mismatch vs f32 reference"

    print("KERNEL_OK")
</pallas_src>

<mosaic_0001>
module attributes {stable_mosaic.version = 11 : i64} {
  func.func @_conv_bn_relu6_kernel(%arg0: i32, %arg1: i32, %arg2: memref<1x18x18x4xbf16, #tpu.memory_space<vmem>>, %arg3: memref<36x128xbf16, #tpu.memory_space<vmem>>, %arg4: memref<1x128xf32, #tpu.memory_space<vmem>>, %arg5: memref<1x8x128xf32, #tpu.memory_space<vmem>>) attributes {dimension_semantics = [#tpu.dimension_semantics<parallel>, #tpu.dimension_semantics<parallel>], iteration_bounds = array<i64: 2, 2>, scalar_prefetch = 0 : i64, scratch_operands = 0 : i64, tpu.core_type = #tpu.core_type<tc>, window_params = [{transform_indices = @transform_0, window_bounds = array<i64: 1, 18, 18, 4>}, {pipeline_mode = #tpu.pipeline_mode<synchronous>, transform_indices = @transform_1, window_bounds = array<i64: 36, 128>}, {pipeline_mode = #tpu.pipeline_mode<synchronous>, transform_indices = @transform_2, window_bounds = array<i64: 1, 128>}, {transform_indices = @transform_3, window_bounds = array<i64: 1, 8, 128>}]} {
    %c8_i32 = arith.constant 8 : i32
    %0 = arith.muli %arg1, %c8_i32 : i32
    %c1_i32 = arith.constant 1 : i32
    %1 = arith.muli %0, %c1_i32 : i32
    %2 = tpu.assume_multiple %1, 8 : i32
    %c0 = arith.constant 0 : index
    %3 = arith.index_cast %2 : i32 to index
    %c0_0 = arith.constant 0 : index
    %c0_1 = arith.constant 0 : index
    %4 = vector.load %arg2[%c0, %3, %c0_0, %c0_1] : memref<1x18x18x4xbf16, #tpu.memory_space<vmem>>, vector<1x10x18x4xbf16>
    %5 = vector.shape_cast %4 : vector<1x10x18x4xbf16> to vector<10x18x4xbf16>
    %6 = vector.extract_strided_slice %5 {offsets = [0, 0, 0], sizes = [8, 16, 4], strides = [1, 1, 1]} : vector<10x18x4xbf16> to vector<8x16x4xbf16>
    %7 = vector.extract_strided_slice %5 {offsets = [0, 1, 0], sizes = [8, 16, 4], strides = [1, 1, 1]} : vector<10x18x4xbf16> to vector<8x16x4xbf16>
    %8 = vector.extract_strided_slice %5 {offsets = [0, 2, 0], sizes = [8, 16, 4], strides = [1, 1, 1]} : vector<10x18x4xbf16> to vector<8x16x4xbf16>
    %9 = vector.extract_strided_slice %5 {offsets = [1, 0, 0], sizes = [8, 16, 4], strides = [1, 1, 1]} : vector<10x18x4xbf16> to vector<8x16x4xbf16>
    %10 = vector.extract_strided_slice %5 {offsets = [1, 1, 0], sizes = [8, 16, 4], strides = [1, 1, 1]} : vector<10x18x4xbf16> to vector<8x16x4xbf16>
    %11 = vector.extract_strided_slice %5 {offsets = [1, 2, 0], sizes = [8, 16, 4], strides = [1, 1, 1]} : vector<10x18x4xbf16> to vector<8x16x4xbf16>
    %12 = vector.extract_strided_slice %5 {offsets = [2, 0, 0], sizes = [8, 16, 4], strides = [1, 1, 1]} : vector<10x18x4xbf16> to vector<8x16x4xbf16>
    %13 = vector.extract_strided_slice %5 {offsets = [2, 1, 0], sizes = [8, 16, 4], strides = [1, 1, 1]} : vector<10x18x4xbf16> to vector<8x16x4xbf16>
    %14 = vector.extract_strided_slice %5 {offsets = [2, 2, 0], sizes = [8, 16, 4], strides = [1, 1, 1]} : vector<10x18x4xbf16> to vector<8x16x4xbf16>
    %15 = tpu.concatenate %6, %7, %8, %9, %10, %11, %12, %13, %14 in 2 : vector<8x16x4xbf16>, vector<8x16x4xbf16>, vector<8x16x4xbf16>, vector<8x16x4xbf16>, vector<8x16x4xbf16>, vector<8x16x4xbf16>, vector<8x16x4xbf16>, vector<8x16x4xbf16>, vector<8x16x4xbf16> -> vector<8x16x36xbf16>
    %16 = vector.shape_cast %15 : vector<8x16x36xbf16> to vector<128x36xbf16>
    %c0_2 = arith.constant 0 : index
    %c0_3 = arith.constant 0 : index
    %17 = vector.load %arg3[%c0_2, %c0_3] : memref<36x128xbf16, #tpu.memory_space<vmem>>, vector<36x128xbf16>
    %cst = arith.constant dense<0.000000e+00> : vector<128x128xf32>
    %18 = tpu.matmul %16, %17, %cst {dimension_numbers = #tpu.dot_dimension_numbers<[1], [0], [0], [1], [0, 0, 1, 1], [], []>} : vector<128x36xbf16>, vector<36x128xbf16>, vector<128x128xf32> -> vector<128x128xf32>
    %c0_4 = arith.constant 0 : index
    %c0_5 = arith.constant 0 : index
    %19 = vector.load %arg4[%c0_4, %c0_5] : memref<1x128xf32, #tpu.memory_space<vmem>>, vector<1x128xf32>
    %20 = vector.broadcast %19 : vector<1x128xf32> to vector<128x128xf32>
    %21 = arith.addf %18, %20 : vector<128x128xf32>
    %cst_6 = arith.constant 0.000000e+00 : f32
    %cst_7 = arith.constant 6.000000e+00 : f32
    %22 = vector.broadcast %cst_6 : f32 to vector<128x128xf32>
    %23 = arith.maximumf %22, %21 : vector<128x128xf32>
    %24 = vector.broadcast %cst_7 : f32 to vector<128x128xf32>
    %25 = arith.minimumf %24, %23 : vector<128x128xf32>
    %26 = tpu.transpose %25, [1, 0] : vector<128x128xf32> -> vector<128x128xf32>
    %27 = vector.extract_strided_slice %26 {offsets = [0, 0], sizes = [8, 128], strides = [1, 1]} : vector<128x128xf32> to vector<8x128xf32>
    %c0_8 = arith.constant 0 : index
    %c0_9 = arith.constant 0 : index
    %c0_10 = arith.constant 0 : index
    %28 = vector.load %arg5[%c0_8, %c0_9, %c0_10] : memref<1x8x128xf32, #tpu.memory_space<vmem>>, vector<1x8x128xf32>
    %29 = vector.shape_cast %28 : vector<1x8x128xf32> to vector<8x128xf32>
    %30 = vector.shape_cast %27 : vector<8x128xf32> to vector<1x8x128xf32>
    tpu.vector_store %arg5[%c0_8, %c0_9, %c0_10], %30 {strides = array<i32>} : memref<1x8x128xf32, #tpu.memory_space<vmem>>, vector<1x8x128xf32>,
    return
  }
  func.func @transform_0(%arg0: i32, %arg1: i32) -> (i32, i32, i32, i32) {
    %c0_i32 = arith.constant 0 : i32
    %c0_i32_0 = arith.constant 0 : i32
    %c0_i32_1 = arith.constant 0 : i32
    %c0_i32_2 = arith.constant 0 : i32
    return %arg0, %c0_i32, %c0_i32_0, %c0_i32_1 : i32, i32, i32, i32
  }
  func.func @transform_1(%arg0: i32, %arg1: i32) -> (i32, i32) {
    %c0_i32 = arith.constant 0 : i32
    %c0_i32_0 = arith.constant 0 : i32
    %c0_i32_1 = arith.constant 0 : i32
    return %c0_i32, %c0_i32_0 : i32, i32
  }
  func.func @transform_2(%arg0: i32, %arg1: i32) -> (i32, i32) {
    %c0_i32 = arith.constant 0 : i32
    %c0_i32_0 = arith.constant 0 : i32
    %c0_i32_1 = arith.constant 0 : i32
    return %c0_i32, %c0_i32_0 : i32, i32
  }
  func.func @transform_3(%arg0: i32, %arg1: i32) -> (i32, i32, i32) {
    %c0_i32 = arith.constant 0 : i32
    %c0_i32_0 = arith.constant 0 : i32
    return %arg0, %c0_i32, %arg1 : i32, i32, i32
  }
}

</mosaic_0001>

<llo_original>
// kernel: basic_conv2d.1
$region0: #{basic_conv2d.1}
  #allocation0 [shape = 'u32[]', space=smem, size = 0x4, offset = 0x4, fixed_abs, tag = 'smem constant byte address 0x4 - core index']
  #allocation1 [shape = 'u32[144,128]{1,0:T(1,128)}', space=vmem, size = 0x12000, scoped, tag = 'internal scratch']
  %s0 = inlined_call_operand.vmem [shape: bf16[2,18,18,4], index: 0, kind: input, shape index: {}]
  %s1 = inlined_call_operand.vmem [shape: bf16[36,128], index: 1, kind: input, shape index: {}]
  %s2 = inlined_call_operand.vmem [shape: f32[1,128], index: 2, kind: input, shape index: {}]
  %s3 = inlined_call_operand.vmem [shape: f32[2,8,256], index: 3, kind: output, shape index: {}]
  %s4 = sld [smem:[#allocation0]]
  $region45: #{basic_conv2d.1} parent=0
    _
  %s6 = ssub.s32 1, %s4
  %s7 = scalar_select 0, %s6, %s4
  loop: start=0, step=1, limit=6
  $region2: #{basic_conv2d.1} parent=0 // loop_pre_header
    _
  $region3: #{basic_conv2d.1} parent=0 // loop_header
    %s9 = sphi 0, %s13
    %p10 = scmp.ge.s32.totalorder %s9, 6
    %s16 = sphi 0, %s28
    %s17 = sphi 0, %s24
    %s18 = sphi 0, %s16
    %s19 = sphi 0, %s17
    %s20 = sphi 0, %s18
    %s21 = sphi 0, %s19
    %s31 = sphi 0, %s33
    %s34 = sphi 0, %s31
    %s35 = sphi 0, %s34
    %s51 = sphi 0, %s35
    %s55 = sphi 0, %s55
    %s57 = sphi 0, %s55
    %s58 = sphi 0, %s57
    %s72 = sphi 0, %s58
    %s76 = sphi 0, %s76
    %s78 = sphi 0, %s76
    %s79 = sphi 0, %s78
    %s93 = sphi 0, %s79
    %s101 = sphi 0, %s103
    %s104 = sphi 0, %s101
    %s105 = sphi 0, %s104
    %s121 = sphi 0, %s105
  $region4: #{basic_conv2d.1} parent=0 // loop_header_branch
    %12 = sbr.rel (%p10) target = $region8
  $region5: #{basic_conv2d.1} parent=0 // loop_body
    %s14 = ssub.s32 %s9, 1
    %s15 = ssub.s32 %s9, 2
    %s22 = sadd.s32 1, %s17
    %p23 = scmp.ge.s32.totalorder %s22, 2
    %s24 = scalar_select %p23, 0, %s22
    %s25 = sadd.s32 1, %s16
    %s26 = scalar_select %p23, %s25, %s16
    %p27 = scmp.ge.s32.totalorder %s26, 2
    %s28 = scalar_select %p27, 0, %s26
    %s29 = ssub.s32 %s16, %s28
    %p30 = scmp.eq.s32.totalorder %s29, 0
    %s32 = sadd.s32 %s31, 1
    %s33 = scalar_select %p30, %s31, %s32
    %p36 = pneg %p30
    %p37 = scmp.eq.s32.totalorder %s9, 3
    %p38 = por %p36, %p37
    %p39 = scmp.ne.s32.totalorder %s31, %s34
    %p40 = scmp.eq.s32.totalorder %s9, 0
    %p41 = por %p39, %p40
    %p42 = scmp.ne.s32.totalorder %s31, %s34
    %p43 = scmp.eq.s32.totalorder %s14, 3
    %p44 = por %p42, %p43
    %p45 = scmp.ne.s32.totalorder %s34, %s35
    %p46 = scmp.eq.s32.totalorder %s14, 0
    %p47 = por %p45, %p46
    %p48 = scmp.ne.s32.totalorder %s34, %s35
    %p49 = scmp.eq.s32.totalorder %s15, 3
    %p50 = por %p48, %p49
    %p52 = scmp.ne.s32.totalorder %s35, %s51
    %p53 = scmp.eq.s32.totalorder %s15, 0
    %p54 = por %p52, %p53
    %s56 = sadd.s32 %s55, 1
    %p59 = scmp.eq.s32.totalorder %s9, 3
    %p60 = scmp.ne.s32.totalorder %s55, %s57
    %p61 = scmp.eq.s32.totalorder %s9, 0
    %p62 = por %p60, %p61
    %p63 = scmp.ne.s32.totalorder %s55, %s57
    %p64 = scmp.eq.s32.totalorder %s14, 3
    %p65 = por %p63, %p64
    %p66 = scmp.ne.s32.totalorder %s57, %s58
    %p67 = scmp.eq.s32.totalorder %s14, 0
    %p68 = por %p66, %p67
    %p69 = scmp.ne.s32.totalorder %s57, %s58
    %p70 = scmp.eq.s32.totalorder %s15, 3
    %p71 = por %p69, %p70
    %p73 = scmp.ne.s32.totalorder %s58, %s72
    %p74 = scmp.eq.s32.totalorder %s15, 0
    %p75 = por %p73, %p74
    %s77 = sadd.s32 %s76, 1
    %p80 = scmp.eq.s32.totalorder %s9, 3
    %p81 = scmp.ne.s32.totalorder %s76, %s78
    %p82 = scmp.eq.s32.totalorder %s9, 0
    %p83 = por %p81, %p82
    %p84 = scmp.ne.s32.totalorder %s76, %s78
    %p85 = scmp.eq.s32.totalorder %s14, 3
    %p86 = por %p84, %p85
    %p87 = scmp.ne.s32.totalorder %s78, %s79
    %p88 = scmp.eq.s32.totalorder %s14, 0
    %p89 = por %p87, %p88
    %p90 = scmp.ne.s32.totalorder %s78, %s79
    %p91 = scmp.eq.s32.totalorder %s15, 3
    %p92 = por %p90, %p91
    %p94 = scmp.ne.s32.totalorder %s79, %s93
    %p95 = scmp.eq.s32.totalorder %s15, 0
    %p96 = por %p94, %p95
    %s97 = ssub.s32 %s16, %s28
    %s98 = ssub.s32 %s17, %s24
    %s99 = sor.u32 %s97, %s98
    %p100 = scmp.eq.s32.totalorder %s99, 0
    %s102 = sadd.s32 %s101, 1
    %s103 = scalar_select %p100, %s101, %s102
    %p106 = pneg %p100
    %p107 = scmp.eq.s32.totalorder %s9, 3
    %p108 = por %p106, %p107
    %p109 = scmp.ne.s32.totalorder %s101, %s104
    %p110 = scmp.eq.s32.totalorder %s9, 0
    %p111 = por %p109, %p110
    %p112 = scmp.ne.s32.totalorder %s101, %s104
    %p113 = scmp.eq.s32.totalorder %s14, 3
    %p114 = por %p112, %p113
    %p115 = scmp.ne.s32.totalorder %s104, %s105
    %p116 = scmp.eq.s32.totalorder %s14, 0
    %p117 = por %p115, %p116
    %p118 = scmp.ne.s32.totalorder %s104, %s105
    %p119 = scmp.eq.s32.totalorder %s15, 3
    %p120 = por %p118, %p119
    %p122 = scmp.ne.s32.totalorder %s105, %s121
    %p123 = scmp.eq.s32.totalorder %s15, 0
    %p124 = por %p122, %p123
    %p125 = scmp.le.s32.totalorder 1, %s9
    %p126 = scmp.lt.s32.totalorder %s9, 5
    %p127 = pnand %p125, %p126
    %p128 = pneg %p127
    // Predicated region
    $region9: #{basic_conv2d.1} parent=5 // pred_check
      _
    $region10: #{basic_conv2d.1} parent=5 // pred_check_branch
      %130 = sbr.rel (%p127) target = $region12
    $region11: #{basic_conv2d.1} parent=5 // pred_region
      %s131 = ssub.s32 %s9, 1
      // Predicated region
      $region13: #{basic_conv2d.1} parent=11 // pred_check
        %p132 = pneg %p68
      $region14: #{basic_conv2d.1} parent=11 // pred_check_branch
        %134 = sbr.rel (%p132) target = $region16
      $region15: #{basic_conv2d.1} parent=11 // pred_region
        _
      $region16: #{basic_conv2d.1} parent=11 // pred_fallthru
        _
      // Predicated region
      $region17: #{basic_conv2d.1} parent=11 // pred_check
        %p135 = pneg %p89
      $region18: #{basic_conv2d.1} parent=11 // pred_check_branch
        %137 = sbr.rel (%p135) target = $region20
      $region19: #{basic_conv2d.1} parent=11 // pred_region
        _
      $region20: #{basic_conv2d.1} parent=11 // pred_fallthru
        _
    $region12: #{basic_conv2d.1} parent=5 // pred_fallthru
      _
    %p138 = scmp.lt.s32.totalorder %s9, 4
    // Predicated region
    $region21: #{basic_conv2d.1} parent=5 // pred_check
      %p139 = pneg %p138
    $region22: #{basic_conv2d.1} parent=5 // pred_check_branch
      %141 = sbr.rel (%p139) target = $region24
    $region23: #{basic_conv2d.1} parent=5 // pred_region
      // Predicated region
      $region25: #{basic_conv2d.1} parent=23 // pred_check
        %p142 = pneg %p41
      $region26: #{basic_conv2d.1} parent=23 // pred_check_branch
        %144 = sbr.rel (%p142) target = $region28
      $region27: #{basic_conv2d.1} parent=23 // pred_region
        %p145 = scmp.lt.s32.totalorder %s16, 1
        %s146 = scalar_select %p145, %s16, 1
        %s147 = smul.addr %s146, 54
        %s148 = smul.addr %s147, 4
        %s149 = scalar_lea.vmem %s0, %s148
      $region28: #{basic_conv2d.1} parent=23 // pred_fallthru
        _
    $region24: #{basic_conv2d.1} parent=5 // pred_fallthru
      _
    %p150 = scmp.le.s32.totalorder 1, %s9
    %p151 = scmp.lt.s32.totalorder %s9, 5
    %p152 = pnand %p150, %p151
    %p153 = pneg %p152
    // Predicated region
    $region29: #{basic_conv2d.1} parent=5 // pred_check
      _
    $region30: #{basic_conv2d.1} parent=5 // pred_check_branch
      %155 = sbr.rel (%p152) target = $region32
    $region31: #{basic_conv2d.1} parent=5 // pred_region
      %s156 = ssub.s32 %s9, 1
      %p157 = scmp.lt.s32.totalorder %s18, 1
      %s158 = scalar_select %p157, %s18, 1
      %s159 = smul.addr %s158, 54
      %s160 = smul.addr %s159, 4
      %s161 = scalar_lea.vmem %s0, %s160
      %p162 = pneg %p47
      %p163 = pneg %p44
      %p164 = pneg %p68
      %p165 = pneg %p65
      %p166 = pneg %p89
      %p167 = pneg %p86
      %p168 = pneg %p117
      %p169 = pneg %p114
      %p170 = scmp.lt.s32.totalorder %s18, 1
      %s171 = scalar_select %p170, %s18, 1
      %p172 = scmp.lt.s32.totalorder %s19, 1
      %s173 = scalar_select %p172, %s19, 1
      %s174 = smul.addr %s171, 2
      %s175 = sadd.s32 %s173, %s174
      %s176 = smul.addr %s175, 8
      %s177 = scalar_lea.vmem %s3, %s176
      %p178 = scmp.lt.s32.totalorder %s18, 1
      %s179 = scalar_select %p178, %s18, 1
      %s180 = smul.addr %s179, 54
      %s181 = smul.addr %s180, 4
      %s182 = scalar_lea.vmem %s0, %s181
      %p183 = scmp.lt.s32.totalorder %s18, 1
      %s184 = scalar_select %p183, %s18, 1
      %p185 = scmp.lt.s32.totalorder %s19, 1
      %s186 = scalar_select %p185, %s19, 1
      %s187 = smul.addr %s184, 2
      %s188 = sadd.s32 %s186, %s187
      %s189 = smul.addr %s188, 8
      %s190 = scalar_lea.vmem %s3, %s189
      %s192 = smul.u32 %s19, 8
      %s193 = smul.u32 %s192, 3
      %s194 = smul.addr %s193, 4
      %s195 = scalar_lea.vmem %s182, %s194
      %v196 = vld [vmem:[%s195] sm:$0xf]
      %v197 = vld [vmem:[%s195 + $0x4] sm:$0xf]
      %v198 = vld [vmem:[%s195 + $0x8] sm:$0x1]
      %v199 = vld [vmem:[%s195 + $0xc] sm:$0xf]
      %v200 = vld [vmem:[%s195 + $0x10] sm:$0xf]
      %v201 = vld [vmem:[%s195 + $0x14] sm:$0x1]
      %v202 = vld [vmem:[%s195 + $0x18] sm:$0xf]
      %v203 = vld [vmem:[%s195 + $0x1c] sm:$0xf]
      %v204 = vld [vmem:[%s195 + $0x20] sm:$0x1]
      %v205 = vld [vmem:[%s195 + $0x24] sm:$0xf]
      %v206 = vld [vmem:[%s195 + $0x28] sm:$0xf]
      %v207 = vld [vmem:[%s195 + $0x2c] sm:$0x1]
      %v208 = vld [vmem:[%s195 + $0x30] sm:$0xf]
      %v209 = vld [vmem:[%s195 + $0x34] sm:$0xf]
      %v210 = vld [vmem:[%s195 + $0x38] sm:$0x1]
      %v211 = vld [vmem:[%s195 + $0x3c] sm:$0xf]
      %v212 = vld [vmem:[%s195 + $0x40] sm:$0xf]
      %v213 = vld [vmem:[%s195 + $0x44] sm:$0x1]
      %v214 = vld [vmem:[%s195 + $0x48] sm:$0xf]
      %v215 = vld [vmem:[%s195 + $0x4c] sm:$0xf]
      %v216 = vld [vmem:[%s195 + $0x50] sm:$0x1]
      %v217 = vld [vmem:[%s195 + $0x54] sm:$0xf]
      %v218 = vld [vmem:[%s195 + $0x58] sm:$0xf]
      %v219 = vld [vmem:[%s195 + $0x5c] sm:$0x1]
      %v220 = vld [vmem:[%s195 + $0x60] sm:$0xf]
      %v221 = vld [vmem:[%s195 + $0x64] sm:$0xf]
      %v222 = vld [vmem:[%s195 + $0x68] sm:$0x1]
      %v223 = vld [vmem:[%s195 + $0x6c] sm:$0xf]
      %v224 = vld [vmem:[%s195 + $0x70] sm:$0xf]
      %v225 = vld [vmem:[%s195 + $0x74] sm:$0x1]
      %v242 = vunpack.c.l.b16 %v196
      %v243 = vunpack.c.l.b16 %v197
      %v244 = vunpack.c.l.b16 %v199
      %v245 = vunpack.c.l.b16 %v200
      %v246 = vunpack.c.l.b16 %v202
      %v247 = vunpack.c.l.b16 %v203
      %v248 = vunpack.c.l.b16 %v205
      %v249 = vunpack.c.l.b16 %v206
      %v250 = vunpack.c.l.b16 %v208
      %v251 = vunpack.c.l.b16 %v209
      %v252 = vunpack.c.l.b16 %v211
      %v253 = vunpack.c.l.b16 %v212
      %v254 = vunpack.c.l.b16 %v214
      %v255 = vunpack.c.l.b16 %v215
      %v256 = vunpack.c.l.b16 %v217
      %v257 = vunpack.c.l.b16 %v218
      %v258 = vpack.c.b16 %v243, %v242
      %v259 = vpack.c.b16 %v245, %v244
      %v260 = vpack.c.b16 %v247, %v246
      %v261 = vpack.c.b16 %v249, %v248
      %v262 = vpack.c.b16 %v251, %v250
      %v263 = vpack.c.b16 %v253, %v252
      %v264 = vpack.c.b16 %v255, %v254
      %v265 = vpack.c.b16 %v257, %v256
      %v274 = vunpack.c.l.b16 %v198
      %v275 = vunpack.c.l.b16 %v201
      %v276 = vunpack.c.l.b16 %v204
      %v277 = vunpack.c.l.b16 %v207
      %v278 = vunpack.c.l.b16 %v210
      %v279 = vunpack.c.l.b16 %v213
      %v280 = vunpack.c.l.b16 %v216
      %v281 = vunpack.c.l.b16 %v219
      %v282 = vpack.c.b16 %v274, %v274
      %v283 = vpack.c.b16 %v275, %v275
      %v284 = vpack.c.b16 %v276, %v276
      %v285 = vpack.c.b16 %v277, %v277
      %v286 = vpack.c.b16 %v278, %v278
      %v287 = vpack.c.b16 %v279, %v279
      %v288 = vpack.c.b16 %v280, %v280
      %v289 = vpack.c.b16 %v281, %v281
      %vm290 = vsmask.f32 7424
      %v292 = vshrl.u32 %v258, 16
      %v294 = vshll.u32 %v258, 16
      %v296 = vrot.slane %v294, 1
      %v297 = vor.u32 %v292, %v296
      %v299 = vshll.u32 %v282, 16
      %v301 = vrot.slane %v299, 1
      %v302 = vsel %vm290, %v297, %v301
      %v304 = vshrl.u32 %v259, 16
      %v306 = vshll.u32 %v259, 16
      %v308 = vrot.slane %v306, 1
      %v309 = vor.u32 %v304, %v308
      %v311 = vshll.u32 %v283, 16
      %v313 = vrot.slane %v311, 1
      %v314 = vsel %vm290, %v309, %v313
      %v316 = vshrl.u32 %v260, 16
      %v318 = vshll.u32 %v260, 16
      %v320 = vrot.slane %v318, 1
      %v321 = vor.u32 %v316, %v320
      %v323 = vshll.u32 %v284, 16
      %v325 = vrot.slane %v323, 1
      %v326 = vsel %vm290, %v321, %v325
      %v328 = vshrl.u32 %v261, 16
      %v330 = vshll.u32 %v261, 16
      %v332 = vrot.slane %v330, 1
      %v333 = vor.u32 %v328, %v332
      %v335 = vshll.u32 %v285, 16
      %v337 = vrot.slane %v335, 1
      %v338 = vsel %vm290, %v333, %v337
      %v340 = vshrl.u32 %v262, 16
      %v342 = vshll.u32 %v262, 16
      %v344 = vrot.slane %v342, 1
      %v345 = vor.u32 %v340, %v344
      %v347 = vshll.u32 %v286, 16
      %v349 = vrot.slane %v347, 1
      %v350 = vsel %vm290, %v345, %v349
      %v352 = vshrl.u32 %v263, 16
      %v354 = vshll.u32 %v263, 16
      %v356 = vrot.slane %v354, 1
      %v357 = vor.u32 %v352, %v356
      %v359 = vshll.u32 %v287, 16
      %v361 = vrot.slane %v359, 1
      %v362 = vsel %vm290, %v357, %v361
      %v364 = vshrl.u32 %v264, 16
      %v366 = vshll.u32 %v264, 16
      %v368 = vrot.slane %v366, 1
      %v369 = vor.u32 %v364, %v368
      %v371 = vshll.u32 %v288, 16
      %v373 = vrot.slane %v371, 1
      %v374 = vsel %vm290, %v369, %v373
      %v376 = vshrl.u32 %v265, 16
      %v378 = vshll.u32 %v265, 16
      %v380 = vrot.slane %v378, 1
      %v381 = vor.u32 %v376, %v380
      %v383 = vshll.u32 %v289, 16
      %v385 = vrot.slane %v383, 1
      %v386 = vsel %vm290, %v381, %v385
      %387 = vrot.lane.b32.xlu0 %v302, 4
      %v388 = vpop.permute.xlu0 %387
      %389 = vrot.lane.b32.xlu0 %v314, 4
      %v390 = vpop.permute.xlu0 %389
      %391 = vrot.lane.b32.xlu0 %v326, 4
      %v392 = vpop.permute.xlu0 %391
      %393 = vrot.lane.b32.xlu0 %v338, 4
      %v394 = vpop.permute.xlu0 %393
      %395 = vrot.lane.b32.xlu0 %v350, 4
      %v396 = vpop.permute.xlu0 %395
      %397 = vrot.lane.b32.xlu0 %v362, 4
      %v398 = vpop.permute.xlu0 %397
      %399 = vrot.lane.b32.xlu0 %v374, 4
      %v400 = vpop.permute.xlu0 %399
      %401 = vrot.lane.b32.xlu0 %v386, 4
      %v402 = vpop.permute.xlu0 %401
      %vm403 = vcmask 1046528
      %v404 = vrot.slane %v258, 1
      %v405 = vrot.slane %v282, 1
      %v406 = vsel %vm403, %v404, %v405
      %v407 = vrot.slane %v259, 1
      %v408 = vrot.slane %v283, 1
      %v409 = vsel %vm403, %v407, %v408
      %v410 = vrot.slane %v260, 1
      %v411 = vrot.slane %v284, 1
      %v412 = vsel %vm403, %v410, %v411
      %v413 = vrot.slane %v261, 1
      %v414 = vrot.slane %v285, 1
      %v415 = vsel %vm403, %v413, %v414
      %v416 = vrot.slane %v262, 1
      %v417 = vrot.slane %v286, 1
      %v418 = vsel %vm403, %v416, %v417
      %v419 = vrot.slane %v263, 1
      %v420 = vrot.slane %v287, 1
      %v421 = vsel %vm403, %v419, %v420
      %v422 = vrot.slane %v264, 1
      %v423 = vrot.slane %v288, 1
      %v424 = vsel %vm403, %v422, %v423
      %v425 = vrot.slane %v265, 1
      %v426 = vrot.slane %v289, 1
      %v427 = vsel %vm403, %v425, %v426
      %428 = vrot.lane.b32.xlu0 %v406, 8
      %v429 = vpop.permute.xlu0 %428
      %430 = vrot.lane.b32.xlu0 %v409, 8
      %v431 = vpop.permute.xlu0 %430
      %432 = vrot.lane.b32.xlu0 %v412, 8
      %v433 = vpop.permute.xlu0 %432
      %434 = vrot.lane.b32.xlu0 %v415, 8
      %v435 = vpop.permute.xlu0 %434
      %436 = vrot.lane.b32.xlu0 %v418, 8
      %v437 = vpop.permute.xlu0 %436
      %438 = vrot.lane.b32.xlu0 %v421, 8
      %v439 = vpop.permute.xlu0 %438
      %440 = vrot.lane.b32.xlu0 %v424, 8
      %v441 = vpop.permute.xlu0 %440
      %442 = vrot.lane.b32.xlu0 %v427, 8
      %v443 = vpop.permute.xlu0 %442
      %v446 = vunpack.c.l.b16 %v220
      %v447 = vunpack.c.l.b16 %v221
      %v448 = vpack.c.b16 %v447, %v446
      %449 = vrot.lane.b32.xlu0 %v259, 12
      %v450 = vpop.permute.xlu0 %449
      %451 = vrot.lane.b32.xlu0 %v260, 12
      %v452 = vpop.permute.xlu0 %451
      %453 = vrot.lane.b32.xlu0 %v261, 12
      %v454 = vpop.permute.xlu0 %453
      %455 = vrot.lane.b32.xlu0 %v262, 12
      %v456 = vpop.permute.xlu0 %455
      %457 = vrot.lane.b32.xlu0 %v263, 12
      %v458 = vpop.permute.xlu0 %457
      %459 = vrot.lane.b32.xlu0 %v264, 12
      %v460 = vpop.permute.xlu0 %459
      %461 = vrot.lane.b32.xlu0 %v265, 12
      %v462 = vpop.permute.xlu0 %461
      %463 = vrot.lane.b32.xlu0 %v448, 12
      %v464 = vpop.permute.xlu0 %463
      %v466 = vunpack.c.l.b16 %v222
      %v467 = vpack.c.b16 %v466, %v466
      %v469 = vshrl.u32 %v448, 16
      %v471 = vshll.u32 %v448, 16
      %v473 = vrot.slane %v471, 1
      %v474 = vor.u32 %v469, %v473
      %v476 = vshll.u32 %v467, 16
      %v478 = vrot.slane %v476, 1
      %v479 = vsel %vm290, %v474, %v478
      %480 = vrot.lane.b32.xlu0 %v314, 16
      %v481 = vpop.permute.xlu0 %480
      %482 = vrot.lane.b32.xlu0 %v326, 16
      %v483 = vpop.permute.xlu0 %482
      %484 = vrot.lane.b32.xlu0 %v338, 16
      %v485 = vpop.permute.xlu0 %484
      %486 = vrot.lane.b32.xlu0 %v350, 16
      %v487 = vpop.permute.xlu0 %486
      %488 = vrot.lane.b32.xlu0 %v362, 16
      %v489 = vpop.permute.xlu0 %488
      %490 = vrot.lane.b32.xlu0 %v374, 16
      %v491 = vpop.permute.xlu0 %490
      %492 = vrot.lane.b32.xlu0 %v386, 16
      %v493 = vpop.permute.xlu0 %492
      %494 = vrot.lane.b32.xlu0 %v479, 16
      %v495 = vpop.permute.xlu0 %494
      %v496 = vrot.slane %v448, 1
      %v497 = vrot.slane %v467, 1
      %v498 = vsel %vm403, %v496, %v497
      %499 = vrot.lane.b32.xlu0 %v409, 20
      %v500 = vpop.permute.xlu0 %499
      %501 = vrot.lane.b32.xlu0 %v412, 20
      %v502 = vpop.permute.xlu0 %501
      %503 = vrot.lane.b32.xlu0 %v415, 20
      %v504 = vpop.permute.xlu0 %503
      %505 = vrot.lane.b32.xlu0 %v418, 20
      %v506 = vpop.permute.xlu0 %505
      %507 = vrot.lane.b32.xlu0 %v421, 20
      %v508 = vpop.permute.xlu0 %507
      %509 = vrot.lane.b32.xlu0 %v424, 20
      %v510 = vpop.permute.xlu0 %509
      %511 = vrot.lane.b32.xlu0 %v427, 20
      %v512 = vpop.permute.xlu0 %511
      %513 = vrot.lane.b32.xlu0 %v498, 20
      %v514 = vpop.permute.xlu0 %513
      %v517 = vunpack.c.l.b16 %v223
      %v518 = vunpack.c.l.b16 %v224
      %v519 = vpack.c.b16 %v518, %v517
      %520 = vrot.lane.b32.xlu0 %v260, 24
      %v521 = vpop.permute.xlu0 %520
      %522 = vrot.lane.b32.xlu0 %v261, 24
      %v523 = vpop.permute.xlu0 %522
      %524 = vrot.lane.b32.xlu0 %v262, 24
      %v525 = vpop.permute.xlu0 %524
      %526 = vrot.lane.b32.xlu0 %v263, 24
      %v527 = vpop.permute.xlu0 %526
      %528 = vrot.lane.b32.xlu0 %v264, 24
      %v529 = vpop.permute.xlu0 %528
      %530 = vrot.lane.b32.xlu0 %v265, 24
      %v531 = vpop.permute.xlu0 %530
      %532 = vrot.lane.b32.xlu0 %v448, 24
      %v533 = vpop.permute.xlu0 %532
      %534 = vrot.lane.b32.xlu0 %v519, 24
      %v535 = vpop.permute.xlu0 %534
      %v537 = vunpack.c.l.b16 %v225
      %v538 = vpack.c.b16 %v537, %v537
      %v540 = vshrl.u32 %v519, 16
      %v542 = vshll.u32 %v519, 16
      %v544 = vrot.slane %v542, 1
      %v545 = vor.u32 %v540, %v544
      %v547 = vshll.u32 %v538, 16
      %v549 = vrot.slane %v547, 1
      %v550 = vsel %vm290, %v545, %v549
      %551 = vrot.lane.b32.xlu0 %v326, 28
      %v552 = vpop.permute.xlu0 %551
      %553 = vrot.lane.b32.xlu0 %v338, 28
      %v554 = vpop.permute.xlu0 %553
      %555 = vrot.lane.b32.xlu0 %v350, 28
      %v556 = vpop.permute.xlu0 %555
      %557 = vrot.lane.b32.xlu0 %v362, 28
      %v558 = vpop.permute.xlu0 %557
      %559 = vrot.lane.b32.xlu0 %v374, 28
      %v560 = vpop.permute.xlu0 %559
      %561 = vrot.lane.b32.xlu0 %v386, 28
      %v562 = vpop.permute.xlu0 %561
      %563 = vrot.lane.b32.xlu0 %v479, 28
      %v564 = vpop.permute.xlu0 %563
      %565 = vrot.lane.b32.xlu0 %v550, 28
      %v566 = vpop.permute.xlu0 %565
      %v567 = vrot.slane %v519, 1
      %v568 = vrot.slane %v538, 1
      %v569 = vsel %vm403, %v567, %v568
      %570 = vrot.lane.b32.xlu0 %v412, 32
      %v571 = vpop.permute.xlu0 %570
      %572 = vrot.lane.b32.xlu0 %v415, 32
      %v573 = vpop.permute.xlu0 %572
      %574 = vrot.lane.b32.xlu0 %v418, 32
      %v575 = vpop.permute.xlu0 %574
      %576 = vrot.lane.b32.xlu0 %v421, 32
      %v577 = vpop.permute.xlu0 %576
      %578 = vrot.lane.b32.xlu0 %v424, 32
      %v579 = vpop.permute.xlu0 %578
      %580 = vrot.lane.b32.xlu0 %v427, 32
      %v581 = vpop.permute.xlu0 %580
      %582 = vrot.lane.b32.xlu0 %v498, 32
      %v583 = vpop.permute.xlu0 %582
      %584 = vrot.lane.b32.xlu0 %v569, 32
      %v585 = vpop.permute.xlu0 %584
      %vm586 = vcmask 31744
      %v588 = vsel %vm586, %v258, %v388
      %v590 = vsel %vm586, %v259, %v390
      %v592 = vsel %vm586, %v260, %v392
      %v594 = vsel %vm586, %v261, %v394
      %v596 = vsel %vm586, %v262, %v396
      %v598 = vsel %vm586, %v263, %v398
      %v600 = vsel %vm586, %v264, %v400
      %v602 = vsel %vm586, %v265, %v402
      %vm603 = vcmask 64512
      %v605 = vsel %vm603, %v588, %v429
      %v607 = vsel %vm603, %v590, %v431
      %v609 = vsel %vm603, %v592, %v433
      %v611 = vsel %vm603, %v594, %v435
      %v613 = vsel %vm603, %v596, %v437
      %v615 = vsel %vm603, %v598, %v439
      %v617 = vsel %vm603, %v600, %v441
      %v619 = vsel %vm603, %v602, %v443
      %vm620 = vcmask 97280
      %v622 = vsel %vm620, %v605, %v450
      %v624 = vsel %vm620, %v607, %v452
      %v626 = vsel %vm620, %v609, %v454
      %v628 = vsel %vm620, %v611, %v456
      %v630 = vsel %vm620, %v613, %v458
      %v632 = vsel %vm620, %v615, %v460
      %v634 = vsel %vm620, %v617, %v462
      %v636 = vsel %vm620, %v619, %v464
      %vm637 = vcmask 130048
      %v639 = vsel %vm637, %v622, %v481
      %v641 = vsel %vm637, %v624, %v483
      %v643 = vsel %vm637, %v626, %v485
      %v645 = vsel %vm637, %v628, %v487
      %v647 = vsel %vm637, %v630, %v489
      %v649 = vsel %vm637, %v632, %v491
      %v651 = vsel %vm637, %v634, %v493
      %v653 = vsel %vm637, %v636, %v495
      %vm654 = vcmask 162816
      %v656 = vsel %vm654, %v639, %v500
      %v658 = vsel %vm654, %v641, %v502
      %v660 = vsel %vm654, %v643, %v504
      %v662 = vsel %vm654, %v645, %v506
      %v664 = vsel %vm654, %v647, %v508
      %v666 = vsel %vm654, %v649, %v510
      %v668 = vsel %vm654, %v651, %v512
      %v670 = vsel %vm654, %v653, %v514
      %vm671 = vcmask 195584
      %v673 = vsel %vm671, %v656, %v521
      %v675 = vsel %vm671, %v658, %v523
      %v677 = vsel %vm671, %v660, %v525
      %v679 = vsel %vm671, %v662, %v527
      %v681 = vsel %vm671, %v664, %v529
      %v683 = vsel %vm671, %v666, %v531
      %v685 = vsel %vm671, %v668, %v533
      %v687 = vsel %vm671, %v670, %v535
      %vm688 = vcmask 228352
      %v690 = vsel %vm688, %v673, %v552
      %v692 = vsel %vm688, %v675, %v554
      %v694 = vsel %vm688, %v677, %v556
      %v696 = vsel %vm688, %v679, %v558
      %v698 = vsel %vm688, %v681, %v560
      %v700 = vsel %vm688, %v683, %v562
      %v702 = vsel %vm688, %v685, %v564
      %v704 = vsel %vm688, %v687, %v566
      %vm705 = vcmask 261120
      %v707 = vsel %vm705, %v690, %v571
      %v709 = vsel %vm705, %v692, %v573
      %v711 = vsel %vm705, %v694, %v575
      %v713 = vsel %vm705, %v696, %v577
      %v715 = vsel %vm705, %v698, %v579
      %v717 = vsel %vm705, %v700, %v581
      %v719 = vsel %vm705, %v702, %v583
      %v721 = vsel %vm705, %v704, %v585
      %v722 = vld [vmem:[%s1] sm:$0xf]
      %v723 = vld [vmem:[%s1 + $0x4] sm:$0xf]
      %v724 = vld [vmem:[%s1 + $0x8] sm:$0xf]
      %v725 = vld [vmem:[%s1 + $0xc] sm:$0xf]
      %v726 = vld [vmem:[%s1 + $0x10] sm:$0x3]
      %v727 = vld [vmem:[%s2] sm:$0x1]
      %v729 = vlaneseq
      %v730 = vshrl.u32 %v729, 7
      %v731 = vsub.s32 0, %v730
      %v732 = vrot.slane %v727, %v731
      %v739 = vunpack.c.l.b16 %v722
      %v740 = vunpack.c.l.b16 %v723
      %v741 = vunpack.c.l.b16 %v724
      %v742 = vunpack.c.l.b16 %v725
      %v743 = vunpack.c.l.b16 %v726
      %v744 = vpack.c.b16 %v740, %v739
      %v745 = vpack.c.b16 %v742, %v741
      %v746 = vpack.c.b16 %v743, %v743
      %vm749 = vcmask 293888
      %v750 = vsel %vm749, %v707, 0
      %v752 = vsel %vm749, %v709, 0
      %v754 = vsel %vm749, %v711, 0
      %v756 = vsel %vm749, %v713, 0
      %v758 = vsel %vm749, %v715, 0
      %v760 = vsel %vm749, %v717, 0
      %v762 = vsel %vm749, %v719, 0
      %v764 = vsel %vm749, %v721, 0
      %vm766 = vcmask 1041408
      %v768 = vsel %vm766, %v746, 0
      %770 = vmatprep.subr.bf16.mxu0 0
      %771 = vmatpush1.bf16.msra.mxu0 %v744
      %772 = vmatprep.subr.bf16.mxu0 0
      %773 = vmatpush1.bf16.msra.mxu0 %v745
      %774 = vmatprep.subr.bf16.mxu0 0
      %775 = vmatpush1.bf16.msra.mxu0 %v768
      %776 = vmatprep.subr.bf16.mxu0 0
      %777 = vmatpush1.bf16.msra.mxu0 0
      %778 = vmatprep.subr.bf16.mxu0 0
      %779 = vmatpush1.bf16.msra.mxu0 0
      %780 = vmatprep.subr.bf16.mxu0 0
      %781 = vmatpush1.bf16.msra.mxu0 0
      %782 = vmatprep.subr.bf16.mxu0 0
      %783 = vmatpush1.bf16.msra.mxu0 0
      %784 = vmatprep.subr.bf16.mxu0 0
      %785 = vmatpush1.bf16.msra.mxu0 0
      %786 = vmatprep.subr.bf16.mxu0 0
      %787 = vmatpush1.bf16.msra.mxu0 0
      %788 = vmatprep.subr.bf16.mxu0 0
      %789 = vmatpush1.bf16.msra.mxu0 0
      %790 = vmatprep.subr.bf16.mxu0 0
      %791 = vmatpush1.bf16.msra.mxu0 0
      %792 = vmatprep.subr.bf16.mxu0 0
      %793 = vmatpush1.bf16.msra.mxu0 0
      %794 = vmatprep.subr.bf16.mxu0 0
      %795 = vmatpush1.bf16.msra.mxu0 0
      %796 = vmatprep.subr.bf16.mxu0 0
      %797 = vmatpush1.bf16.msra.mxu0 0
      %798 = vmatprep.subr.bf16.mxu0 0
      %799 = vmatpush1.bf16.msra.mxu0 0
      %800 = vmatprep.subr.bf16.mxu0 0
      %801 = vmatpush1.bf16.msra.mxu0 0
      %802 = vmatprep.mubr.bf16.mxu0 0
      %803 = vmatmul.mubr.bf16.gmra.mrb[0].mxu0 %v750
      %v804 = vpop.f32.mrb[0].mxu0
      %v805 = vadd.f32 %v732, %v804
      %v806 = vpop.f32.mrb[0].mxu0
      %v807 = vpop.f32.mrb[0].mxu0
      %v808 = vadd.f32 %v732, %v807
      %v809 = vpop.f32.mrb[0].mxu0
      %810 = vmatprep.mubr.bf16.mxu0 0
      %811 = vmatmul.mubr.bf16.gmra.mrb[0].mxu0 %v752
      %v812 = vpop.f32.mrb[0].mxu0
      %v813 = vadd.f32 %v732, %v812
      %v814 = vpop.f32.mrb[0].mxu0
      %v815 = vpop.f32.mrb[0].mxu0
      %v816 = vadd.f32 %v732, %v815
      %v817 = vpop.f32.mrb[0].mxu0
      %818 = vmatprep.mubr.bf16.mxu0 0
      %819 = vmatmul.mubr.bf16.gmra.mrb[0].mxu0 %v754
      %v820 = vpop.f32.mrb[0].mxu0
      %v821 = vadd.f32 %v732, %v820
      %v822 = vpop.f32.mrb[0].mxu0
      %v823 = vpop.f32.mrb[0].mxu0
      %v824 = vadd.f32 %v732, %v823
      %v825 = vpop.f32.mrb[0].mxu0
      %826 = vmatprep.mubr.bf16.mxu0 0
      %827 = vmatmul.mubr.bf16.gmra.mrb[0].mxu0 %v756
      %v828 = vpop.f32.mrb[0].mxu0
      %v829 = vadd.f32 %v732, %v828
      %v830 = vpop.f32.mrb[0].mxu0
      %v831 = vpop.f32.mrb[0].mxu0
      %v832 = vadd.f32 %v732, %v831
      %v833 = vpop.f32.mrb[0].mxu0
      %834 = vmatprep.mubr.bf16.mxu0 0
      %835 = vmatmul.mubr.bf16.gmra.mrb[0].mxu0 %v758
      %v836 = vpop.f32.mrb[0].mxu0
      %v837 = vadd.f32 %v732, %v836
      %v838 = vpop.f32.mrb[0].mxu0
      %v839 = vpop.f32.mrb[0].mxu0
      %v840 = vadd.f32 %v732, %v839
      %v841 = vpop.f32.mrb[0].mxu0
      %842 = vmatprep.mubr.bf16.mxu0 0
      %843 = vmatmul.mubr.bf16.gmra.mrb[0].mxu0 %v760
      %v844 = vpop.f32.mrb[0].mxu0
      %v845 = vadd.f32 %v732, %v844
      %v846 = vpop.f32.mrb[0].mxu0
      %v847 = vpop.f32.mrb[0].mxu0
      %v848 = vadd.f32 %v732, %v847
      %v849 = vpop.f32.mrb[0].mxu0
      %850 = vmatprep.mubr.bf16.mxu0 0
      %851 = vmatmul.mubr.bf16.gmra.mrb[0].mxu0 %v762
      %v852 = vpop.f32.mrb[0].mxu0
      %v853 = vadd.f32 %v732, %v852
      %v854 = vpop.f32.mrb[0].mxu0
      %v855 = vpop.f32.mrb[0].mxu0
      %v856 = vadd.f32 %v732, %v855
      %v857 = vpop.f32.mrb[0].mxu0
      %858 = vmatprep.mubr.bf16.mxu0 0
      %859 = vmatmul.mubr.bf16.gmra.mrb[0].mxu0 %v764
      %v860 = vpop.f32.mrb[0].mxu0
      %v861 = vadd.f32 %v732, %v860
      %v862 = vpop.f32.mrb[0].mxu0
      %v863 = vpop.f32.mrb[0].mxu0
      %v864 = vadd.f32 %v732, %v863
      %v865 = vpop.f32.mrb[0].mxu0
      %866 = vdwg.mxu0
      %v867 = vmax.f32 %v805, 0.0
      %v868 = vmax.f32 %v808, 0.0
      %v869 = vmax.f32 %v813, 0.0
      %v870 = vmax.f32 %v816, 0.0
      %v871 = vmax.f32 %v821, 0.0
      %v872 = vmax.f32 %v824, 0.0
      %v873 = vmax.f32 %v829, 0.0
      %v874 = vmax.f32 %v832, 0.0
      %v875 = vmax.f32 %v837, 0.0
      %v876 = vmax.f32 %v840, 0.0
      %v877 = vmax.f32 %v845, 0.0
      %v878 = vmax.f32 %v848, 0.0
      %v879 = vmax.f32 %v853, 0.0
      %v880 = vmax.f32 %v856, 0.0
      %v881 = vmax.f32 %v861, 0.0
      %v882 = vmax.f32 %v864, 0.0
      %v883 = vmin.f32 %v867, 6.0
      %v884 = vmin.f32 %v868, 6.0
      %v885 = vmin.f32 %v869, 6.0
      %v886 = vmin.f32 %v870, 6.0
      %v887 = vmin.f32 %v871, 6.0
      %v888 = vmin.f32 %v872, 6.0
      %v889 = vmin.f32 %v873, 6.0
      %v890 = vmin.f32 %v874, 6.0
      %v891 = vmin.f32 %v875, 6.0
      %v892 = vmin.f32 %v876, 6.0
      %v893 = vmin.f32 %v877, 6.0
      %v894 = vmin.f32 %v878, 6.0
      %v895 = vmin.f32 %v879, 6.0
      %v896 = vmin.f32 %v880, 6.0
      %v897 = vmin.f32 %v881, 6.0
      %v898 = vmin.f32 %v882, 6.0
      %899 = vxpose.xlu0.b32.start [1/16] %v883, 128
      %900 = vxpose.xlu0.b32.cont [2/16] %v884, 128
      %901 = vxpose.xlu0.b32.cont [3/16] %v885, 128
      %902 = vxpose.xlu0.b32.cont [4/16] %v886, 128
      %903 = vxpose.xlu0.b32.cont [5/16] %v887, 128
      %904 = vxpose.xlu0.b32.cont [6/16] %v888, 128
      %905 = vxpose.xlu0.b32.cont [7/16] %v889, 128
      %906 = vxpose.xlu0.b32.cont [8/16] %v890, 128
      %907 = vxpose.xlu0.b32.cont [9/16] %v891, 128
      %908 = vxpose.xlu0.b32.cont [10/16] %v892, 128
      %909 = vxpose.xlu0.b32.cont [11/16] %v893, 128
      %910 = vxpose.xlu0.b32.cont [12/16] %v894, 128
      %911 = vxpose.xlu0.b32.cont [13/16] %v895, 128
      %912 = vxpose.xlu0.b32.cont [14/16] %v896, 128
      %913 = vxpose.xlu0.b32.cont [15/16] %v897, 128
      %914 = vxpose.xlu0.b32.end [16/16] %v898, 128
      %v915 = vpop.trf.xlu0
      %v916 = vpop.trf.xlu0
      %v917 = vpop.trf.xlu0
      %v918 = vpop.trf.xlu0
      %v919 = vpop.trf.xlu0
      %v920 = vpop.trf.xlu0
      %v921 = vpop.trf.xlu0
      %v922 = vpop.trf.xlu0
      %v923 = vpop.trf.xlu0
      %v924 = vpop.trf.xlu0
      %v925 = vpop.trf.xlu0
      %v926 = vpop.trf.xlu0
      %v927 = vpop.trf.xlu0
      %v928 = vpop.trf.xlu0
      %v929 = vpop.trf.xlu0
      %v930 = vpop.trf.xlu0
      %931 = vst [vmem:[%s190] sm:$0xff] %v915
      %p932 = scmp.lt.s32.totalorder %s18, 1
      %s933 = scalar_select %p932, %s18, 1
      %p934 = scmp.lt.s32.totalorder %s19, 1
      %s935 = scalar_select %p934, %s19, 1
      %s936 = smul.addr %s933, 2
      %s937 = sadd.s32 %s935, %s936
      %s938 = smul.addr %s937, 8
      %s939 = scalar_lea.vmem %s3, %s938
      // Predicated region
      $region33: #{basic_conv2d.1} parent=31 // pred_check
        %p940 = pneg %p114
      $region34: #{basic_conv2d.1} parent=31 // pred_check_branch
        %942 = sbr.rel (%p940) target = $region36
      $region35: #{basic_conv2d.1} parent=31 // pred_region
        _
      $region36: #{basic_conv2d.1} parent=31 // pred_fallthru
        _
    $region32: #{basic_conv2d.1} parent=5 // pred_fallthru
      _
    %p943 = scmp.le.s32.totalorder 2, %s9
    // Predicated region
    $region37: #{basic_conv2d.1} parent=5 // pred_check
      %p944 = pneg %p943
    $region38: #{basic_conv2d.1} parent=5 // pred_check_branch
      %946 = sbr.rel (%p944) target = $region40
    $region39: #{basic_conv2d.1} parent=5 // pred_region
      %s947 = ssub.s32 %s9, 2
      // Predicated region
      $region41: #{basic_conv2d.1} parent=39 // pred_check
        %p948 = pneg %p120
      $region42: #{basic_conv2d.1} parent=39 // pred_check_branch
        %950 = sbr.rel (%p948) target = $region44
      $region43: #{basic_conv2d.1} parent=39 // pred_region
        %p951 = scmp.lt.s32.totalorder %s20, 1
        %s952 = scalar_select %p951, %s20, 1
        %p953 = scmp.lt.s32.totalorder %s21, 1
        %s954 = scalar_select %p953, %s21, 1
        %s955 = smul.addr %s952, 2
        %s956 = sadd.s32 %s954, %s955
        %s957 = smul.addr %s956, 8
        %s958 = scalar_lea.vmem %s3, %s957
      $region44: #{basic_conv2d.1} parent=39 // pred_fallthru
        _
    $region40: #{basic_conv2d.1} parent=5 // pred_fallthru
      _
  $region6: #{basic_conv2d.1} parent=0 // loop_footer
    %s13 = sadd.s32 1, %s9
  $region7: #{basic_conv2d.1} parent=0 // loop_footer_branch
    %8 = sbr.rel target = $region3
  $region8: #{basic_conv2d.1} parent=0 // loop_exit
    _

</llo_original>
